<compile_context>
chip_gen: v7x
topology: tpu7x:2x2x1
jax: 0.10.0
libtpu: 0.0.40
codegen_flags: <defaults>
</compile_context>

<pallas_src>
import jax
import jax.numpy as jnp
from jax.experimental import pallas as pl
from jax.experimental.pallas import tpu as pltpu

_LANE = 128      # vreg lane width
_SUBLANE = 8     # vreg sublane depth (f32)


def _round_up(n, m):
    return (n + m - 1) // m * m


# ----------------------------------------------------------------------------
# Fused Pallas kernel: encoder stand-in -> latent head -> decoder stand-in
# ----------------------------------------------------------------------------
def _sketch_rnn_kernel(xf_ref, w_enc_ref, b_enc_ref, w_lat_ref, b_lat_ref,
                       w_dec_ref, b_dec_ref, eps_ref, out_ref):
    H1 = eps_ref.shape[1]
    SF = w_dec_ref.shape[1]

    # --- encoder stand-in -----------------------------------------------------
    # TODO(synk): encoder internals are constructor-injected in the PyTorch
    #             module and not defined there; a tanh(Linear) stand-in is used.
    xf = xf_ref[...]                                             # [Bp, S*F]
    h = jnp.tanh(
        jnp.dot(xf, w_enc_ref[...], preferred_element_type=jnp.float32)
        + b_enc_ref[...])                                        # [Bp, H0]

    # --- latent head (the module's own compute) -------------------------------
    # mu | log_sigma in one fused matmul:  [Bp, H0] @ [H0, 2*H1]
    lat = (jnp.dot(h, w_lat_ref[...], preferred_element_type=jnp.float32)
           + b_lat_ref[...])                                     # [Bp, 2*H1]
    mu = lat[:, :H1]
    sigma = jnp.exp(lat[:, H1:])                                 # EUP
    z = mu + sigma * eps_ref[...]
    hz = jnp.tanh(z)                                             # EUP

    # --- decoder stand-in ------------------------------------------------------
    # TODO(synk): decoder internals are constructor-injected and not defined;
    #             a Linear on concat([z, hz]) stand-in is used.  The concat is
    #             expressed as two matmuls on sublane-aligned weight slices
    #             (split at row H1=16, a multiple of the 8-row sublane tile).
    dec = (jnp.dot(z, w_dec_ref[:H1, :], preferred_element_type=jnp.float32)
           + jnp.dot(hz, w_dec_ref[H1:, :], preferred_element_type=jnp.float32)
           + b_dec_ref[...])                                     # [Bp, S*F]

    # --- single lane-dense packed output: [z | hz | mu | sigma | dec | pad] ----
    out_ref[:, 0:H1] = z
    out_ref[:, H1:2 * H1] = hz
    out_ref[:, 2 * H1:3 * H1] = mu
    out_ref[:, 3 * H1:4 * H1] = sigma
    out_ref[:, 4 * H1:4 * H1 + SF] = dec
    pad = out_ref.shape[1] - (4 * H1 + SF)                       # static Python int
    if pad > 0:
        out_ref[:, 4 * H1 + SF:] = jnp.zeros(
            (out_ref.shape[0], pad), dtype=out_ref.dtype)


# ----------------------------------------------------------------------------
# One-time parameter fusion (mu / log_sigma Linear layers -> single matmul)
# ----------------------------------------------------------------------------
def prepare_params(params):
    return {
        "w_enc": params["w_enc"], "b_enc": params["b_enc"],
        "w_lat": jnp.concatenate([params["w_mu"], params["w_ls"]], axis=1),
        "b_lat": jnp.concatenate([params["b_mu"], params["b_ls"]], axis=1),
        "w_dec": params["w_dec"], "b_dec": params["b_dec"],
    }


# ----------------------------------------------------------------------------
# Full SketchRnnNet.forward (wrapper: layout plumbing + one pallas_call)
# ----------------------------------------------------------------------------
@jax.jit
def sketch_rnn_forward(x, fused_params, eps):
    """Returns (output[B,S,F], z, hz, z_mean, z_sigma) -- latents are [B, H1]."""
    B, S, F = x.shape
    H1 = eps.shape[1]
    SF = S * F

    xf = x.reshape(B, SF)                                        # feature-last
    Bp = _round_up(max(B, _SUBLANE), _SUBLANE)                   # sublane-dense rows
    out_w = 4 * H1 + SF
    out_wp = _round_up(out_w, _LANE)                             # lane-dense output

    # Zero-pad batch rows so every vreg load/store is full (pad rows discarded).
    xf_p = jnp.pad(xf, ((0, Bp - B), (0, 0)))
    eps_p = jnp.pad(eps, ((0, Bp - B), (0, 0)))

    vmem = pl.BlockSpec(memory_space=pltpu.MemorySpace.VMEM)     # whole-array block
    packed = pl.pallas_call(
        _sketch_rnn_kernel,
        out_shape=jax.ShapeDtypeStruct((Bp, out_wp), jnp.float32),
        in_specs=[vmem] * 8,
        out_specs=vmem,
    )(xf_p, fused_params["w_enc"], fused_params["b_enc"],
      fused_params["w_lat"], fused_params["b_lat"],
      fused_params["w_dec"], fused_params["b_dec"], eps_p)

    z       = packed[:B, 0:H1]
    hz      = packed[:B, H1:2 * H1]
    z_mean  = packed[:B, 2 * H1:3 * H1]
    z_sigma = packed[:B, 3 * H1:4 * H1]
    output  = packed[:B, 4 * H1:4 * H1 + SF].reshape(B, S, F)
    return output, z, hz, z_mean, z_sigma


if __name__ == "__main__":
    # Small shapes consistent with the module:
    #   x: [batch=2, seq=8, stroke_features=5]   (SketchRNN-style stroke input)
    #   linear_hidden_size = (H0=32, H1=16)
    B, S, F = 2, 8, 5
    H0, H1 = 32, 16

    key = jax.random.PRNGKey(0)
    k_x, k_e, k_mu, k_ls, k_d, k_eps = jax.random.split(key, 6)

    x = jax.random.normal(k_x, (B, S, F), dtype=jnp.float32)

    params = {
        "w_enc": 0.1 * jax.random.normal(k_e, (S * F, H0), dtype=jnp.float32),
        "b_enc": jnp.zeros((1, H0), dtype=jnp.float32),
        "w_mu":  0.1 * jax.random.normal(k_mu, (H0, H1), dtype=jnp.float32),
        "b_mu":  jnp.zeros((1, H1), dtype=jnp.float32),
        "w_ls":  0.1 * jax.random.normal(k_ls, (H0, H1), dtype=jnp.float32),
        "b_ls":  jnp.zeros((1, H1), dtype=jnp.float32),
        "w_dec": 0.1 * jax.random.normal(k_d, (2 * H1, S * F), dtype=jnp.float32),
        "b_dec": jnp.zeros((1, S * F), dtype=jnp.float32),
    }
    fused_params = prepare_params(params)

    # std_z ~ N(0, 1)  -- deterministic stand-in for the module's np.random.normal
    # TODO(synk): could be generated in-kernel with pltpu.prng_seed/stateful_normal;
    #             kept as an explicit input for deterministic cross-checking.
    eps = jax.random.normal(k_eps, (B, H1), dtype=jnp.float32)

    output, z, hz, z_mean, z_sigma = sketch_rnn_forward(x, fused_params, eps)
    jax.block_until_ready(output)
    jax.block_until_ready(z)

    # Cross-check the fused Pallas kernel against plain JAX.
    xf = x.reshape(B, -1)
    h_ref = jnp.tanh(xf @ params["w_enc"] + params["b_enc"])
    mu_ref = h_ref @ params["w_mu"] + params["b_mu"]
    sg_ref = jnp.exp(h_ref @ params["w_ls"] + params["b_ls"])
    z_ref = mu_ref + sg_ref * eps
    hz_ref = jnp.tanh(z_ref)
    dec_ref = (jnp.concatenate([z_ref, hz_ref], axis=-1) @ params["w_dec"]
               + params["b_dec"]).reshape(B, S, F)

    assert jnp.allclose(z, z_ref, atol=1e-5), "z mismatch"
    assert jnp.allclose(hz, hz_ref, atol=1e-5), "hz mismatch"
    assert jnp.allclose(z_mean, mu_ref, atol=1e-5), "mu mismatch"
    assert jnp.allclose(z_sigma, sg_ref, atol=1e-5), "sigma mismatch"
    assert jnp.allclose(output, dec_ref, atol=1e-5), "decoder output mismatch"

    print("KERNEL_OK")
</pallas_src>

<mosaic_0001>
module attributes {stable_mosaic.version = 11 : i64} {
  func.func @_sketch_rnn_kernel(%arg0: memref<8x40xf32, #tpu.memory_space<vmem>>, %arg1: memref<40x32xf32, #tpu.memory_space<vmem>>, %arg2: memref<1x32xf32, #tpu.memory_space<vmem>>, %arg3: memref<32x32xf32, #tpu.memory_space<vmem>>, %arg4: memref<1x32xf32, #tpu.memory_space<vmem>>, %arg5: memref<32x40xf32, #tpu.memory_space<vmem>>, %arg6: memref<1x40xf32, #tpu.memory_space<vmem>>, %arg7: memref<8x16xf32, #tpu.memory_space<vmem>>, %arg8: memref<8x128xf32, #tpu.memory_space<vmem>>) attributes {dimension_semantics = [], scalar_prefetch = 0 : i64, scratch_operands = 0 : i64, tpu.core_type = #tpu.core_type<tc>} {
    %c0 = arith.constant 0 : index
    %c0_0 = arith.constant 0 : index
    %0 = vector.load %arg0[%c0, %c0_0] : memref<8x40xf32, #tpu.memory_space<vmem>>, vector<8x40xf32>
    %c0_1 = arith.constant 0 : index
    %c0_2 = arith.constant 0 : index
    %1 = vector.load %arg1[%c0_1, %c0_2] : memref<40x32xf32, #tpu.memory_space<vmem>>, vector<40x32xf32>
    %cst = arith.constant dense<0.000000e+00> : vector<8x32xf32>
    %2 = tpu.matmul %0, %1, %cst {dimension_numbers = #tpu.dot_dimension_numbers<[1], [0], [0], [1], [0, 0, 1, 1], [], []>} : vector<8x40xf32>, vector<40x32xf32>, vector<8x32xf32> -> vector<8x32xf32>
    %c0_3 = arith.constant 0 : index
    %c0_4 = arith.constant 0 : index
    %3 = vector.load %arg2[%c0_3, %c0_4] : memref<1x32xf32, #tpu.memory_space<vmem>>, vector<1x32xf32>
    %4 = vector.broadcast %3 : vector<1x32xf32> to vector<8x32xf32>
    %5 = arith.addf %2, %4 : vector<8x32xf32>
    %6 = math.tanh %5 : vector<8x32xf32>
    %c0_5 = arith.constant 0 : index
    %c0_6 = arith.constant 0 : index
    %7 = vector.load %arg3[%c0_5, %c0_6] : memref<32x32xf32, #tpu.memory_space<vmem>>, vector<32x32xf32>
    %cst_7 = arith.constant dense<0.000000e+00> : vector<8x32xf32>
    %8 = tpu.matmul %6, %7, %cst_7 {dimension_numbers = #tpu.dot_dimension_numbers<[1], [0], [0], [1], [0, 0, 1, 1], [], []>} : vector<8x32xf32>, vector<32x32xf32>, vector<8x32xf32> -> vector<8x32xf32>
    %c0_8 = arith.constant 0 : index
    %c0_9 = arith.constant 0 : index
    %9 = vector.load %arg4[%c0_8, %c0_9] : memref<1x32xf32, #tpu.memory_space<vmem>>, vector<1x32xf32>
    %10 = vector.broadcast %9 : vector<1x32xf32> to vector<8x32xf32>
    %11 = arith.addf %8, %10 : vector<8x32xf32>
    %12 = vector.extract_strided_slice %11 {offsets = [0, 0], sizes = [8, 16], strides = [1, 1]} : vector<8x32xf32> to vector<8x16xf32>
    %13 = vector.extract_strided_slice %11 {offsets = [0, 16], sizes = [8, 16], strides = [1, 1]} : vector<8x32xf32> to vector<8x16xf32>
    %14 = math.exp %13 : vector<8x16xf32>
    %c0_10 = arith.constant 0 : index
    %c0_11 = arith.constant 0 : index
    %15 = vector.load %arg7[%c0_10, %c0_11] : memref<8x16xf32, #tpu.memory_space<vmem>>, vector<8x16xf32>
    %16 = arith.mulf %14, %15 : vector<8x16xf32>
    %17 = arith.addf %12, %16 : vector<8x16xf32>
    %18 = math.tanh %17 : vector<8x16xf32>
    %c0_12 = arith.constant 0 : index
    %c0_13 = arith.constant 0 : index
    %19 = vector.load %arg5[%c0_12, %c0_13] : memref<32x40xf32, #tpu.memory_space<vmem>>, vector<16x40xf32>
    %cst_14 = arith.constant dense<0.000000e+00> : vector<8x40xf32>
    %20 = tpu.matmul %17, %19, %cst_14 {dimension_numbers = #tpu.dot_dimension_numbers<[1], [0], [0], [1], [0, 0, 1, 1], [], []>} : vector<8x16xf32>, vector<16x40xf32>, vector<8x40xf32> -> vector<8x40xf32>
    %c16 = arith.constant 16 : index
    %c0_15 = arith.constant 0 : index
    %21 = vector.load %arg5[%c16, %c0_15] : memref<32x40xf32, #tpu.memory_space<vmem>>, vector<16x40xf32>
    %cst_16 = arith.constant dense<0.000000e+00> : vector<8x40xf32>
    %22 = tpu.matmul %18, %21, %cst_16 {dimension_numbers = #tpu.dot_dimension_numbers<[1], [0], [0], [1], [0, 0, 1, 1], [], []>} : vector<8x16xf32>, vector<16x40xf32>, vector<8x40xf32> -> vector<8x40xf32>
    %23 = arith.addf %20, %22 : vector<8x40xf32>
    %c0_17 = arith.constant 0 : index
    %c0_18 = arith.constant 0 : index
    %24 = vector.load %arg6[%c0_17, %c0_18] : memref<1x40xf32, #tpu.memory_space<vmem>>, vector<1x40xf32>
    %25 = vector.broadcast %24 : vector<1x40xf32> to vector<8x40xf32>
    %26 = arith.addf %23, %25 : vector<8x40xf32>
    %c0_19 = arith.constant 0 : index
    %c0_20 = arith.constant 0 : index
    %27 = vector.load %arg8[%c0_19, %c0_20] : memref<8x128xf32, #tpu.memory_space<vmem>>, vector<8x16xf32>
    tpu.vector_store %arg8[%c0_19, %c0_20], %17 {strides = array<i32>} : memref<8x128xf32, #tpu.memory_space<vmem>>, vector<8x16xf32>,
    %c0_21 = arith.constant 0 : index
    %c16_22 = arith.constant 16 : index
    %28 = vector.load %arg8[%c0_21, %c16_22] : memref<8x128xf32, #tpu.memory_space<vmem>>, vector<8x16xf32>
    tpu.vector_store %arg8[%c0_21, %c16_22], %18 {strides = array<i32>} : memref<8x128xf32, #tpu.memory_space<vmem>>, vector<8x16xf32>,
    %c0_23 = arith.constant 0 : index
    %c32 = arith.constant 32 : index
    %29 = vector.load %arg8[%c0_23, %c32] : memref<8x128xf32, #tpu.memory_space<vmem>>, vector<8x16xf32>
    tpu.vector_store %arg8[%c0_23, %c32], %12 {strides = array<i32>} : memref<8x128xf32, #tpu.memory_space<vmem>>, vector<8x16xf32>,
    %c0_24 = arith.constant 0 : index
    %c48 = arith.constant 48 : index
    %30 = vector.load %arg8[%c0_24, %c48] : memref<8x128xf32, #tpu.memory_space<vmem>>, vector<8x16xf32>
    tpu.vector_store %arg8[%c0_24, %c48], %14 {strides = array<i32>} : memref<8x128xf32, #tpu.memory_space<vmem>>, vector<8x16xf32>,
    %c0_25 = arith.constant 0 : index
    %c64 = arith.constant 64 : index
    %31 = vector.load %arg8[%c0_25, %c64] : memref<8x128xf32, #tpu.memory_space<vmem>>, vector<8x40xf32>
    tpu.vector_store %arg8[%c0_25, %c64], %26 {strides = array<i32>} : memref<8x128xf32, #tpu.memory_space<vmem>>, vector<8x40xf32>,
    %cst_26 = arith.constant 0.000000e+00 : f32
    %32 = vector.broadcast %cst_26 : f32 to vector<8x24xf32>
    %c0_27 = arith.constant 0 : index
    %c104 = arith.constant 104 : index
    %33 = vector.load %arg8[%c0_27, %c104] : memref<8x128xf32, #tpu.memory_space<vmem>>, vector<8x24xf32>
    tpu.vector_store %arg8[%c0_27, %c104], %32 {strides = array<i32>} : memref<8x128xf32, #tpu.memory_space<vmem>>, vector<8x24xf32>,
    return
  }
}

</mosaic_0001>

<llo_original>
// kernel: sketch_rnn_forward.1
$region0: #{sketch_rnn_forward.1}
  #allocation0 [shape = 'u32[]', space=smem, size = 0x4, offset = 0x4, fixed_abs, tag = 'smem constant byte address 0x4 - core index']
  #allocation1 [shape = 'u32[144,128]{1,0:T(1,128)}', space=vmem, size = 0x12000, scoped, tag = 'internal scratch']
  %s0 = inlined_call_operand.vmem [shape: f32[8,40], index: 0, kind: input, shape index: {}]
  %s1 = inlined_call_operand.vmem [shape: f32[40,32], index: 1, kind: input, shape index: {}]
  %s2 = inlined_call_operand.vmem [shape: f32[1,32], index: 2, kind: input, shape index: {}]
  %s3 = inlined_call_operand.vmem [shape: f32[32,32], index: 3, kind: input, shape index: {}]
  %s4 = inlined_call_operand.vmem [shape: f32[1,32], index: 4, kind: input, shape index: {}]
  %s5 = inlined_call_operand.vmem [shape: f32[32,40], index: 5, kind: input, shape index: {}]
  %s6 = inlined_call_operand.vmem [shape: f32[1,40], index: 6, kind: input, shape index: {}]
  %s7 = inlined_call_operand.vmem [shape: f32[8,16], index: 7, kind: input, shape index: {}]
  %s8 = inlined_call_operand.vmem [shape: f32[8,128], index: 8, kind: output, shape index: {}]
  %s9 = sld [smem:[#allocation0]]
  $region42: #{sketch_rnn_forward.1} parent=0
    _
  %s11 = ssub.s32 1, %s9
  %s12 = scalar_select 0, %s11, %s9
  // Predicated region
  $region2: #{sketch_rnn_forward.1} parent=0 // pred_check
    _
  $region3: #{sketch_rnn_forward.1} parent=0 // pred_check_branch
    %14 = sbr.rel (0) target = $region5
  $region4: #{sketch_rnn_forward.1} parent=0 // pred_region
    _
  $region5: #{sketch_rnn_forward.1} parent=0 // pred_fallthru
    _
  // Predicated region
  $region6: #{sketch_rnn_forward.1} parent=0 // pred_check
    _
  $region7: #{sketch_rnn_forward.1} parent=0 // pred_check_branch
    %16 = sbr.rel (0) target = $region9
  $region8: #{sketch_rnn_forward.1} parent=0 // pred_region
    _
  $region9: #{sketch_rnn_forward.1} parent=0 // pred_fallthru
    _
  // Predicated region
  $region10: #{sketch_rnn_forward.1} parent=0 // pred_check
    _
  $region11: #{sketch_rnn_forward.1} parent=0 // pred_check_branch
    %18 = sbr.rel (0) target = $region13
  $region12: #{sketch_rnn_forward.1} parent=0 // pred_region
    _
  $region13: #{sketch_rnn_forward.1} parent=0 // pred_fallthru
    _
  // Predicated region
  $region14: #{sketch_rnn_forward.1} parent=0 // pred_check
    _
  $region15: #{sketch_rnn_forward.1} parent=0 // pred_check_branch
    %20 = sbr.rel (0) target = $region17
  $region16: #{sketch_rnn_forward.1} parent=0 // pred_region
    _
  $region17: #{sketch_rnn_forward.1} parent=0 // pred_fallthru
    _
  // Predicated region
  $region18: #{sketch_rnn_forward.1} parent=0 // pred_check
    _
  $region19: #{sketch_rnn_forward.1} parent=0 // pred_check_branch
    %22 = sbr.rel (0) target = $region21
  $region20: #{sketch_rnn_forward.1} parent=0 // pred_region
    _
  $region21: #{sketch_rnn_forward.1} parent=0 // pred_fallthru
    _
  // Predicated region
  $region22: #{sketch_rnn_forward.1} parent=0 // pred_check
    _
  $region23: #{sketch_rnn_forward.1} parent=0 // pred_check_branch
    %24 = sbr.rel (0) target = $region25
  $region24: #{sketch_rnn_forward.1} parent=0 // pred_region
    _
  $region25: #{sketch_rnn_forward.1} parent=0 // pred_fallthru
    _
  // Predicated region
  $region26: #{sketch_rnn_forward.1} parent=0 // pred_check
    _
  $region27: #{sketch_rnn_forward.1} parent=0 // pred_check_branch
    %26 = sbr.rel (0) target = $region29
  $region28: #{sketch_rnn_forward.1} parent=0 // pred_region
    _
  $region29: #{sketch_rnn_forward.1} parent=0 // pred_fallthru
    _
  // Predicated region
  $region30: #{sketch_rnn_forward.1} parent=0 // pred_check
    _
  $region31: #{sketch_rnn_forward.1} parent=0 // pred_check_branch
    %28 = sbr.rel (0) target = $region33
  $region32: #{sketch_rnn_forward.1} parent=0 // pred_region
    _
  $region33: #{sketch_rnn_forward.1} parent=0 // pred_fallthru
    _
  %v29 = vld [vmem:[%s0] sm:$0xff]
  %v30 = vld [vmem:[%s1] sm:$0xff]
  %v31 = vld [vmem:[%s1 + $0x8] sm:$0xff]
  %v32 = vld [vmem:[%s1 + $0x10] sm:$0xff]
  %v33 = vld [vmem:[%s1 + $0x18] sm:$0xff]
  %v34 = vld [vmem:[%s1 + $0x20] sm:$0xff]
  %v35 = vld [vmem:[%s2] sm:$0x1]
  %v37 = vlaneseq
  %v38 = vshrl.u32 %v37, 7
  %v39 = vsub.s32 0, %v38
  %v40 = vrot.slane %v35, %v39
  %vm42 = vcmask 326656
  %v44 = vsel %vm42, %v29, 0
  %46 = vmatprep.subr.mxu0 0.0
  %47 = vmatpush1.msra.mxu0 %v30
  %48 = vmatprep.subr.mxu0 0.0
  %49 = vmatpush1.msra.mxu0 %v31
  %50 = vmatprep.subr.mxu0 0.0
  %51 = vmatpush1.msra.mxu0 %v32
  %52 = vmatprep.subr.mxu0 0.0
  %53 = vmatpush1.msra.mxu0 %v33
  %54 = vmatprep.subr.mxu0 0.0
  %55 = vmatpush1.msra.mxu0 %v34
  %56 = vmatprep.subr.mxu0 0.0
  %57 = vmatpush1.msra.mxu0 0.0
  %58 = vmatprep.subr.mxu0 0.0
  %59 = vmatpush1.msra.mxu0 0.0
  %60 = vmatprep.subr.mxu0 0.0
  %61 = vmatpush1.msra.mxu0 0.0
  %62 = vmatprep.subr.mxu0 0.0
  %63 = vmatpush1.msra.mxu0 0.0
  %64 = vmatprep.subr.mxu0 0.0
  %65 = vmatpush1.msra.mxu0 0.0
  %66 = vmatprep.subr.mxu0 0.0
  %67 = vmatpush1.msra.mxu0 0.0
  %68 = vmatprep.subr.mxu0 0.0
  %69 = vmatpush1.msra.mxu0 0.0
  %70 = vmatprep.subr.mxu0 0.0
  %71 = vmatpush1.msra.mxu0 0.0
  %72 = vmatprep.subr.mxu0 0.0
  %73 = vmatpush1.msra.mxu0 0.0
  %74 = vmatprep.subr.mxu0 0.0
  %75 = vmatpush1.msra.mxu0 0.0
  %76 = vmatprep.subr.mxu0 0.0
  %77 = vmatpush1.msra.mxu0 0.0
  %78 = vmatprep.subr.mxu0 0.0
  %79 = vmatpush1.msra.mxu0 0.0
  %80 = vmatprep.subr.mxu0 0.0
  %81 = vmatpush1.msra.mxu0 0.0
  %82 = vmatprep.subr.mxu0 0.0
  %83 = vmatpush1.msra.mxu0 0.0
  %84 = vmatprep.subr.mxu0 0.0
  %85 = vmatpush1.msra.mxu0 0.0
  %86 = vmatprep.subr.mxu0 0.0
  %87 = vmatpush1.msra.mxu0 0.0
  %88 = vmatprep.subr.mxu0 0.0
  %89 = vmatpush1.msra.mxu0 0.0
  %90 = vmatprep.subr.mxu0 0.0
  %91 = vmatpush1.msra.mxu0 0.0
  %92 = vmatprep.subr.mxu0 0.0
  %93 = vmatpush1.msra.mxu0 0.0
  %94 = vmatprep.subr.mxu0 0.0
  %95 = vmatpush1.msra.mxu0 0.0
  %96 = vmatprep.subr.mxu0 0.0
  %97 = vmatpush1.msra.mxu0 0.0
  %98 = vmatprep.subr.mxu0 0.0
  %99 = vmatpush1.msra.mxu0 0.0
  %100 = vmatprep.subr.mxu0 0.0
  %101 = vmatpush1.msra.mxu0 0.0
  %102 = vmatprep.subr.mxu0 0.0
  %103 = vmatpush1.msra.mxu0 0.0
  %104 = vmatprep.subr.mxu0 0.0
  %105 = vmatpush1.msra.mxu0 0.0
  %106 = vmatprep.subr.mxu0 0.0
  %107 = vmatpush1.msra.mxu0 0.0
  %108 = vmatprep.subr.mxu0 0.0
  %109 = vmatpush1.msra.mxu0 0.0
  %110 = vmatprep.mubr.f32.mxu0 0.0
  %111 = vmatmul.mubr.f32.gmra.mrb[0].mxu0 %v44
  %v112 = vpop.f32.mrb[0].mxu0
  %v113 = vadd.f32 %v40, %v112
  %v114 = vpop.f32.mrb[0].mxu0
  %115 = vdwg.mxu0
  %v116 = vtanh.pop %v113
  %v117 = vld [vmem:[%s3] sm:$0xff]
  %v118 = vld [vmem:[%s3 + $0x8] sm:$0xff]
  %v119 = vld [vmem:[%s3 + $0x10] sm:$0xff]
  %v120 = vld [vmem:[%s3 + $0x18] sm:$0xff]
  %v121 = vld [vmem:[%s4] sm:$0x1]
  %v123 = vlaneseq
  %v124 = vshrl.u32 %v123, 7
  %v125 = vsub.s32 0, %v124
  %v126 = vrot.slane %v121, %v125
  %vm128 = vcmask 261120
  %v130 = vsel %vm128, %v116, 0
  %132 = vmatprep.subr.mxu0 0.0
  %133 = vmatpush1.msra.mxu0 %v117
  %134 = vmatprep.subr.mxu0 0.0
  %135 = vmatpush1.msra.mxu0 %v118
  %136 = vmatprep.subr.mxu0 0.0
  %137 = vmatpush1.msra.mxu0 %v119
  %138 = vmatprep.subr.mxu0 0.0
  %139 = vmatpush1.msra.mxu0 %v120
  %140 = vmatprep.subr.mxu0 0.0
  %141 = vmatpush1.msra.mxu0 0.0
  %142 = vmatprep.subr.mxu0 0.0
  %143 = vmatpush1.msra.mxu0 0.0
  %144 = vmatprep.subr.mxu0 0.0
  %145 = vmatpush1.msra.mxu0 0.0
  %146 = vmatprep.subr.mxu0 0.0
  %147 = vmatpush1.msra.mxu0 0.0
  %148 = vmatprep.subr.mxu0 0.0
  %149 = vmatpush1.msra.mxu0 0.0
  %150 = vmatprep.subr.mxu0 0.0
  %151 = vmatpush1.msra.mxu0 0.0
  %152 = vmatprep.subr.mxu0 0.0
  %153 = vmatpush1.msra.mxu0 0.0
  %154 = vmatprep.subr.mxu0 0.0
  %155 = vmatpush1.msra.mxu0 0.0
  %156 = vmatprep.subr.mxu0 0.0
  %157 = vmatpush1.msra.mxu0 0.0
  %158 = vmatprep.subr.mxu0 0.0
  %159 = vmatpush1.msra.mxu0 0.0
  %160 = vmatprep.subr.mxu0 0.0
  %161 = vmatpush1.msra.mxu0 0.0
  %162 = vmatprep.subr.mxu0 0.0
  %163 = vmatpush1.msra.mxu0 0.0
  %164 = vmatprep.subr.mxu0 0.0
  %165 = vmatpush1.msra.mxu0 0.0
  %166 = vmatprep.subr.mxu0 0.0
  %167 = vmatpush1.msra.mxu0 0.0
  %168 = vmatprep.subr.mxu0 0.0
  %169 = vmatpush1.msra.mxu0 0.0
  %170 = vmatprep.subr.mxu0 0.0
  %171 = vmatpush1.msra.mxu0 0.0
  %172 = vmatprep.subr.mxu0 0.0
  %173 = vmatpush1.msra.mxu0 0.0
  %174 = vmatprep.subr.mxu0 0.0
  %175 = vmatpush1.msra.mxu0 0.0
  %176 = vmatprep.subr.mxu0 0.0
  %177 = vmatpush1.msra.mxu0 0.0
  %178 = vmatprep.subr.mxu0 0.0
  %179 = vmatpush1.msra.mxu0 0.0
  %180 = vmatprep.subr.mxu0 0.0
  %181 = vmatpush1.msra.mxu0 0.0
  %182 = vmatprep.subr.mxu0 0.0
  %183 = vmatpush1.msra.mxu0 0.0
  %184 = vmatprep.subr.mxu0 0.0
  %185 = vmatpush1.msra.mxu0 0.0
  %186 = vmatprep.subr.mxu0 0.0
  %187 = vmatpush1.msra.mxu0 0.0
  %188 = vmatprep.subr.mxu0 0.0
  %189 = vmatpush1.msra.mxu0 0.0
  %190 = vmatprep.subr.mxu0 0.0
  %191 = vmatpush1.msra.mxu0 0.0
  %192 = vmatprep.subr.mxu0 0.0
  %193 = vmatpush1.msra.mxu0 0.0
  %194 = vmatprep.subr.mxu0 0.0
  %195 = vmatpush1.msra.mxu0 0.0
  %196 = vmatprep.mubr.f32.mxu0 0.0
  %197 = vmatmul.mubr.f32.gmra.mrb[0].mxu0 %v130
  %v198 = vpop.f32.mrb[0].mxu0
  %v199 = vadd.f32 %v126, %v198
  %v200 = vpop.f32.mrb[0].mxu0
  %201 = vdwg.mxu0
  %v202 = vmul.f32 %v199, 1.442695
  %v203 = vpow.pop %v202
  %v204 = vld [vmem:[%s7] sm:$0xff]
  %206 = vrot.lane.b32.xlu0 %v204, 16
  %v207 = vpop.permute.xlu0 %206
  %v209 = vmul.f32 %v203, %v207
  %211 = vrot.lane.b32.xlu0 %v209, 112
  %v212 = vpop.permute.xlu0 %211
  %v214 = vadd.f32 %v199, %v212
  %v215 = vtanh.pop %v214
  %v216 = vld [vmem:[%s5] sm:$0xff]
  %v217 = vld [vmem:[%s5 + $0x8] sm:$0xff]
  %v218 = vld [vmem:[%s5 + $0x10] sm:$0xff]
  %v219 = vld [vmem:[%s5 + $0x18] sm:$0xff]
  %vm220 = vcmask 130048
  %v222 = vsel %vm220, %v215, 0
  %224 = vmatprep.subr.mxu0 0.0
  %225 = vmatpush1.msra.mxu0 %v218
  %226 = vmatprep.subr.mxu0 0.0
  %227 = vmatpush1.msra.mxu0 %v219
  %228 = vmatprep.subr.mxu0 0.0
  %229 = vmatpush1.msra.mxu0 0.0
  %230 = vmatprep.subr.mxu0 0.0
  %231 = vmatpush1.msra.mxu0 0.0
  %232 = vmatprep.subr.mxu0 0.0
  %233 = vmatpush1.msra.mxu0 0.0
  %234 = vmatprep.subr.mxu0 0.0
  %235 = vmatpush1.msra.mxu0 0.0
  %236 = vmatprep.subr.mxu0 0.0
  %237 = vmatpush1.msra.mxu0 0.0
  %238 = vmatprep.subr.mxu0 0.0
  %239 = vmatpush1.msra.mxu0 0.0
  %240 = vmatprep.subr.mxu0 0.0
  %241 = vmatpush1.msra.mxu0 0.0
  %242 = vmatprep.subr.mxu0 0.0
  %243 = vmatpush1.msra.mxu0 0.0
  %244 = vmatprep.subr.mxu0 0.0
  %245 = vmatpush1.msra.mxu0 0.0
  %246 = vmatprep.subr.mxu0 0.0
  %247 = vmatpush1.msra.mxu0 0.0
  %248 = vmatprep.subr.mxu0 0.0
  %249 = vmatpush1.msra.mxu0 0.0
  %250 = vmatprep.subr.mxu0 0.0
  %251 = vmatpush1.msra.mxu0 0.0
  %252 = vmatprep.subr.mxu0 0.0
  %253 = vmatpush1.msra.mxu0 0.0
  %254 = vmatprep.subr.mxu0 0.0
  %255 = vmatpush1.msra.mxu0 0.0
  %256 = vmatprep.subr.mxu0 0.0
  %257 = vmatpush1.msra.mxu0 0.0
  %258 = vmatprep.subr.mxu0 0.0
  %259 = vmatpush1.msra.mxu0 0.0
  %260 = vmatprep.subr.mxu0 0.0
  %261 = vmatpush1.msra.mxu0 0.0
  %262 = vmatprep.subr.mxu0 0.0
  %263 = vmatpush1.msra.mxu0 0.0
  %264 = vmatprep.subr.mxu0 0.0
  %265 = vmatpush1.msra.mxu0 0.0
  %266 = vmatprep.subr.mxu0 0.0
  %267 = vmatpush1.msra.mxu0 0.0
  %268 = vmatprep.subr.mxu0 0.0
  %269 = vmatpush1.msra.mxu0 0.0
  %270 = vmatprep.subr.mxu0 0.0
  %271 = vmatpush1.msra.mxu0 0.0
  %272 = vmatprep.subr.mxu0 0.0
  %273 = vmatpush1.msra.mxu0 0.0
  %274 = vmatprep.subr.mxu0 0.0
  %275 = vmatpush1.msra.mxu0 0.0
  %276 = vmatprep.subr.mxu0 0.0
  %277 = vmatpush1.msra.mxu0 0.0
  %278 = vmatprep.subr.mxu0 0.0
  %279 = vmatpush1.msra.mxu0 0.0
  %280 = vmatprep.subr.mxu0 0.0
  %281 = vmatpush1.msra.mxu0 0.0
  %282 = vmatprep.subr.mxu0 0.0
  %283 = vmatpush1.msra.mxu0 0.0
  %284 = vmatprep.subr.mxu0 0.0
  %285 = vmatpush1.msra.mxu0 0.0
  %286 = vmatprep.subr.mxu0 0.0
  %287 = vmatpush1.msra.mxu0 0.0
  %288 = vmatprep.mubr.f32.mxu0 0.0
  %289 = vmatmul.mubr.f32.gmra.mrb[0].mxu0 %v222
  %v290 = vpop.f32.mrb[0].mxu0
  %v291 = vadd.f32 0.0, %v290
  %v292 = vpop.f32.mrb[0].mxu0
  %293 = vdwg.mxu0
  %v295 = vsel %vm220, %v214, 0
  %297 = vmatprep.subr.mxu0 0.0
  %298 = vmatpush1.msra.mxu0 %v216
  %299 = vmatprep.subr.mxu0 0.0
  %300 = vmatpush1.msra.mxu0 %v217
  %301 = vmatprep.subr.mxu0 0.0
  %302 = vmatpush1.msra.mxu0 0.0
  %303 = vmatprep.subr.mxu0 0.0
  %304 = vmatpush1.msra.mxu0 0.0
  %305 = vmatprep.subr.mxu0 0.0
  %306 = vmatpush1.msra.mxu0 0.0
  %307 = vmatprep.subr.mxu0 0.0
  %308 = vmatpush1.msra.mxu0 0.0
  %309 = vmatprep.subr.mxu0 0.0
  %310 = vmatpush1.msra.mxu0 0.0
  %311 = vmatprep.subr.mxu0 0.0
  %312 = vmatpush1.msra.mxu0 0.0
  %313 = vmatprep.subr.mxu0 0.0
  %314 = vmatpush1.msra.mxu0 0.0
  %315 = vmatprep.subr.mxu0 0.0
  %316 = vmatpush1.msra.mxu0 0.0
  %317 = vmatprep.subr.mxu0 0.0
  %318 = vmatpush1.msra.mxu0 0.0
  %319 = vmatprep.subr.mxu0 0.0
  %320 = vmatpush1.msra.mxu0 0.0
  %321 = vmatprep.subr.mxu0 0.0
  %322 = vmatpush1.msra.mxu0 0.0
  %323 = vmatprep.subr.mxu0 0.0
  %324 = vmatpush1.msra.mxu0 0.0
  %325 = vmatprep.subr.mxu0 0.0
  %326 = vmatpush1.msra.mxu0 0.0
  %327 = vmatprep.subr.mxu0 0.0
  %328 = vmatpush1.msra.mxu0 0.0
  %329 = vmatprep.subr.mxu0 0.0
  %330 = vmatpush1.msra.mxu0 0.0
  %331 = vmatprep.subr.mxu0 0.0
  %332 = vmatpush1.msra.mxu0 0.0
  %333 = vmatprep.subr.mxu0 0.0
  %334 = vmatpush1.msra.mxu0 0.0
  %335 = vmatprep.subr.mxu0 0.0
  %336 = vmatpush1.msra.mxu0 0.0
  %337 = vmatprep.subr.mxu0 0.0
  %338 = vmatpush1.msra.mxu0 0.0
  %339 = vmatprep.subr.mxu0 0.0
  %340 = vmatpush1.msra.mxu0 0.0
  %341 = vmatprep.subr.mxu0 0.0
  %342 = vmatpush1.msra.mxu0 0.0
  %343 = vmatprep.subr.mxu0 0.0
  %344 = vmatpush1.msra.mxu0 0.0
  %345 = vmatprep.subr.mxu0 0.0
  %346 = vmatpush1.msra.mxu0 0.0
  %347 = vmatprep.subr.mxu0 0.0
  %348 = vmatpush1.msra.mxu0 0.0
  %349 = vmatprep.subr.mxu0 0.0
  %350 = vmatpush1.msra.mxu0 0.0
  %351 = vmatprep.subr.mxu0 0.0
  %352 = vmatpush1.msra.mxu0 0.0
  %353 = vmatprep.subr.mxu0 0.0
  %354 = vmatpush1.msra.mxu0 0.0
  %355 = vmatprep.subr.mxu0 0.0
  %356 = vmatpush1.msra.mxu0 0.0
  %357 = vmatprep.subr.mxu0 0.0
  %358 = vmatpush1.msra.mxu0 0.0
  %359 = vmatprep.subr.mxu0 0.0
  %360 = vmatpush1.msra.mxu0 0.0
  %361 = vmatprep.mubr.f32.mxu0 0.0
  %362 = vmatmul.mubr.f32.gmra.mrb[0].mxu0 %v295
  %v363 = vpop.f32.mrb[0].mxu0
  %v364 = vadd.f32 %v291, %v363
  %v365 = vpop.f32.mrb[0].mxu0
  %366 = vdwg.mxu0
  %v367 = vld [vmem:[%s6] sm:$0x1]
  %v369 = vlaneseq
  %v370 = vshrl.u32 %v369, 7
  %v371 = vsub.s32 0, %v370
  %v372 = vrot.slane %v367, %v371
  %v374 = vadd.f32 %v364, %v372
  %375 = vst.msk [vmem:[%s8] sm:$0xff] %vm220, %v214
  %376 = vrot.lane.b32.xlu0 %v215, 16
  %v377 = vpop.permute.xlu0 %376
  %vm379 = vcmask 261248
  %380 = vst.msk [vmem:[%s8] sm:$0xff] %vm379, %v377
  %382 = vrot.lane.b32.xlu0 %v199, 32
  %v383 = vpop.permute.xlu0 %382
  %vm385 = vcmask 392448
  %386 = vst.msk [vmem:[%s8] sm:$0xff] %vm385, %v383
  %388 = vrot.lane.b32.xlu0 %v203, 32
  %v389 = vpop.permute.xlu0 %388
  %vm391 = vcmask 523648
  %392 = vst.msk [vmem:[%s8] sm:$0xff] %vm391, %v389
  %394 = vrot.lane.b32.xlu0 %v374, 64
  %v395 = vpop.permute.xlu0 %394
  %vm397 = vcmask 851456
  %398 = vst.msk [vmem:[%s8] sm:$0xff] %vm397, %v395
  %vm399 = vcmask 1048384
  %400 = vst.msk [vmem:[%s8] sm:$0xff] %vm399, 0.0
  // Predicated region
  $region34: #{sketch_rnn_forward.1} parent=0 // pred_check
    _
  $region35: #{sketch_rnn_forward.1} parent=0 // pred_check_branch
    %402 = sbr.rel (0) target = $region37
  $region36: #{sketch_rnn_forward.1} parent=0 // pred_region
    _
  $region37: #{sketch_rnn_forward.1} parent=0 // pred_fallthru
    _
  // Predicated region
  $region38: #{sketch_rnn_forward.1} parent=0 // pred_check
    _
  $region39: #{sketch_rnn_forward.1} parent=0 // pred_check_branch
    %404 = sbr.rel (0) target = $region41
  $region40: #{sketch_rnn_forward.1} parent=0 // pred_region
    _
  $region41: #{sketch_rnn_forward.1} parent=0 // pred_fallthru
    _

</llo_original>
